<compile_context>
chip_gen: v7x
topology: tpu7x:2x2x1
jax: 0.10.0
libtpu: 0.0.40
codegen_flags: <defaults>
</compile_context>

<pallas_src>
import functools

import jax
import jax.numpy as jnp
from jax.experimental import pallas as pl
from jax.experimental.pallas import tpu as pltpu

_LANE = 128
_SUBLANE = 8


def _round_up(x, m):
    return (x + m - 1) // m * m


def _classifier_kernel(x1_ref, x2_ref, w1a_ref, w1b_ref, b1_ref, w2_ref, b2_ref,
                       out_ref):
    cdt = w1a_ref.dtype
    # fc1 as two stacked-half matmuls (avoids materializing concat(x1, x2)).
    # In-kernel f32 -> bf16 cast of the activations; f32 accumulation on MXU.
    h = (jnp.dot(x1_ref[...].astype(cdt), w1a_ref[...],
                 preferred_element_type=jnp.float32)
         + jnp.dot(x2_ref[...].astype(cdt), w1b_ref[...],
                   preferred_element_type=jnp.float32))
    # Bias + ReLU in f32 on the VPU (no bf16 elementwise -> safe on v5e).
    h = jnp.maximum(h + b1_ref[...], 0.0)
    # fc2 into an 8-lane padded output; only the first n_out lanes are real.
    out = jnp.dot(h.astype(cdt), w2_ref[...],
                  preferred_element_type=jnp.float32) + b2_ref[...]
    out_ref[...] = out.astype(out_ref.dtype)


def prepare_softmax_classifier_params(w1, b1, w2, b2, compute_dtype=jnp.bfloat16):
    """One-time (model-load) weight prep: split/transpose/pad/cast fc1 & fc2.

    w1: (n_in, 2*n_in)  PyTorch fc1.weight (out, in)
    b1: (n_in,)
    w2: (n_out, n_in)   PyTorch fc2.weight
    b2: (n_out,)
    """
    n_in = w1.shape[0]
    n_out = w2.shape[0]
    assert w1.shape == (n_in, 2 * n_in)
    assert w2.shape == (n_out, n_in)

    hp = _round_up(n_in, _LANE)        # hidden dim, lane-padded (stays in-register)
    np_ = _round_up(n_out, _SUBLANE)   # output dim padded to 8 lanes only

    w1t = w1.T.astype(compute_dtype)   # (2*n_in, n_in)
    w1a = jnp.zeros((n_in, hp), compute_dtype).at[:, :n_in].set(w1t[:n_in])
    w1b = jnp.zeros((n_in, hp), compute_dtype).at[:, :n_in].set(w1t[n_in:])
    b1p = jnp.zeros((1, hp), jnp.float32).at[:, :n_in].set(b1.astype(jnp.float32))
    w2p = jnp.zeros((hp, np_), compute_dtype).at[:n_in, :n_out].set(
        w2.T.astype(compute_dtype))
    b2p = jnp.zeros((1, np_), jnp.float32).at[:, :n_out].set(b2.astype(jnp.float32))
    return w1a, w1b, b1p, w2p, b2p


@functools.partial(jax.jit, static_argnames=("n_out", "tb"))
def softmax_classifier(x1, x2, w1a, w1b, b1p, w2p, b2p, *, n_out=2, tb=2048):
    """Hot-path forward: logits = fc2(relu(fc1(concat(x1, x2))))."""
    B, n_in = x1.shape
    assert x2.shape == (B, n_in)
    hp = w1a.shape[1]
    np_ = w2p.shape[1]
    cdt = w1a.dtype
    itemsize = jnp.dtype(cdt).itemsize

    # Batch tile: big (amortize per-step overhead), multiple of 8, and — when
    # the batch is large enough — at most half the batch so the 1-D grid has
    # >= 2 tiles and both v7x TensorCores get work.
    bp8 = _round_up(B, _SUBLANE)
    tb_eff = min(tb, bp8)
    if bp8 >= 2 * _SUBLANE:
        tb_eff = min(tb_eff, _round_up(pl.cdiv(bp8, 2), _SUBLANE))
    grid = (pl.cdiv(B, tb_eff),)

    out = pl.pallas_call(
        _classifier_kernel,
        out_shape=jax.ShapeDtypeStruct((B, np_), jnp.float32),
        grid=grid,
        in_specs=[
            pl.BlockSpec((tb_eff, n_in), lambda i: (i, 0)),  # x1 tile (pipelined)
            pl.BlockSpec((tb_eff, n_in), lambda i: (i, 0)),  # x2 tile (pipelined)
            pl.BlockSpec((n_in, hp), lambda i: (0, 0)),      # W1a, VMEM-resident
            pl.BlockSpec((n_in, hp), lambda i: (0, 0)),      # W1b, VMEM-resident
            pl.BlockSpec((1, hp), lambda i: (0, 0)),         # b1,  VMEM-resident
            pl.BlockSpec((hp, np_), lambda i: (0, 0)),       # W2,  VMEM-resident
            pl.BlockSpec((1, np_), lambda i: (0, 0)),        # b2,  VMEM-resident
        ],
        out_specs=pl.BlockSpec((tb_eff, np_), lambda i: (i, 0)),
        compiler_params=pltpu.CompilerParams(
            dimension_semantics=("parallel",)),
        cost_estimate=pl.CostEstimate(
            flops=2 * B * (2 * n_in) * hp + 2 * B * hp * np_,
            transcendentals=0,
            bytes_accessed=(2 * B * n_in * 4           # x1, x2 (f32 in HBM)
                            + 2 * n_in * hp * itemsize  # W1a, W1b
                            + hp * 4                    # b1
                            + hp * np_ * itemsize       # W2
                            + np_ * 4                   # b2
                            + B * np_ * 4)),            # out (8 lanes f32)
    )(x1, x2, w1a, w1b, b1p, w2p, b2p)
    return out[:, :n_out]


def _reference(x1, x2, w1, b1, w2, b2, compute_dtype=jnp.float32):
    x = jnp.concatenate((x1, x2), axis=1).astype(compute_dtype)
    h = jnp.maximum(
        jnp.dot(x, w1.T.astype(compute_dtype),
                preferred_element_type=jnp.float32) + b1, 0.0)
    return jnp.dot(h.astype(compute_dtype), w2.T.astype(compute_dtype),
                   preferred_element_type=jnp.float32) + b2


if __name__ == "__main__":
    key = jax.random.PRNGKey(0)
    B, n_in = 8, 32

    k1, k2, k3, k4, k5, k6 = jax.random.split(key, 6)
    x1 = jax.random.normal(k1, (B, n_in), dtype=jnp.float32)
    x2 = jax.random.normal(k2, (B, n_in), dtype=jnp.float32)

    # Synthetic params with PyTorch nn.Linear shapes: fc1(2*n_in -> n_in), fc2(n_in -> 2).
    w1 = 0.1 * jax.random.normal(k3, (n_in, 2 * n_in), dtype=jnp.float32)
    b1 = 0.1 * jax.random.normal(k4, (n_in,), dtype=jnp.float32)
    w2 = 0.1 * jax.random.normal(k5, (2, n_in), dtype=jnp.float32)
    b2 = 0.1 * jax.random.normal(k6, (2,), dtype=jnp.float32)

    # Weight prep done once (model load), off the hot path.
    params = prepare_softmax_classifier_params(w1, b1, w2, b2)

    out = softmax_classifier(x1, x2, *params, n_out=2)
    jax.block_until_ready(out)
    assert out.shape == (B, 2)

    ref_bf16 = _reference(x1, x2, w1, b1, w2, b2, compute_dtype=jnp.bfloat16)
    ref_f32 = _reference(x1, x2, w1, b1, w2, b2, compute_dtype=jnp.float32)
    assert jnp.allclose(out, ref_bf16, atol=2e-3, rtol=2e-3), "mismatch vs bf16-matched reference"
    assert jnp.allclose(out, ref_f32, atol=5e-2, rtol=5e-2), "mismatch vs f32 reference"

    # TODO(synk): the rest of SentTransModel (BERT embeddings, TransformerEncoder,
    # ragged Python-loop flow cells, randperm speaker shuffle) is not expressed as
    # Pallas kernels; only the consist-classifier head (SoftmaxClassifier) is.
    print("KERNEL_OK")
</pallas_src>

<mosaic_0001>
module attributes {stable_mosaic.version = 11 : i64} {
  func.func @_classifier_kernel(%arg0: i32, %arg1: memref<8x32xf32, #tpu.memory_space<vmem>>, %arg2: memref<8x32xf32, #tpu.memory_space<vmem>>, %arg3: memref<32x128xbf16, #tpu.memory_space<vmem>>, %arg4: memref<32x128xbf16, #tpu.memory_space<vmem>>, %arg5: memref<1x128xf32, #tpu.memory_space<vmem>>, %arg6: memref<128x8xbf16, #tpu.memory_space<vmem>>, %arg7: memref<1x8xf32, #tpu.memory_space<vmem>>, %arg8: memref<8x8xf32, #tpu.memory_space<vmem>>) attributes {dimension_semantics = [#tpu.dimension_semantics<parallel>], iteration_bounds = array<i64: 1>, scalar_prefetch = 0 : i64, scratch_operands = 0 : i64, tpu.core_type = #tpu.core_type<tc>, window_params = [{transform_indices = @transform_0, window_bounds = array<i64: 8, 32>}, {transform_indices = @transform_1, window_bounds = array<i64: 8, 32>}, {pipeline_mode = #tpu.pipeline_mode<synchronous>, transform_indices = @transform_2, window_bounds = array<i64: 32, 128>}, {pipeline_mode = #tpu.pipeline_mode<synchronous>, transform_indices = @transform_3, window_bounds = array<i64: 32, 128>}, {pipeline_mode = #tpu.pipeline_mode<synchronous>, transform_indices = @transform_4, window_bounds = array<i64: 1, 128>}, {pipeline_mode = #tpu.pipeline_mode<synchronous>, transform_indices = @transform_5, window_bounds = array<i64: 128, 8>}, {pipeline_mode = #tpu.pipeline_mode<synchronous>, transform_indices = @transform_6, window_bounds = array<i64: 1, 8>}, {transform_indices = @transform_7, window_bounds = array<i64: 8, 8>}]} {
    %c0 = arith.constant 0 : index
    %c0_0 = arith.constant 0 : index
    %0 = vector.load %arg1[%c0, %c0_0] : memref<8x32xf32, #tpu.memory_space<vmem>>, vector<8x32xf32>
    %1 = arith.truncf %0 : vector<8x32xf32> to vector<8x32xbf16>
    %c0_1 = arith.constant 0 : index
    %c0_2 = arith.constant 0 : index
    %2 = vector.load %arg3[%c0_1, %c0_2] : memref<32x128xbf16, #tpu.memory_space<vmem>>, vector<32x128xbf16>
    %cst = arith.constant dense<0.000000e+00> : vector<8x128xf32>
    %3 = tpu.matmul %1, %2, %cst {dimension_numbers = #tpu.dot_dimension_numbers<[1], [0], [0], [1], [0, 0, 1, 1], [], []>} : vector<8x32xbf16>, vector<32x128xbf16>, vector<8x128xf32> -> vector<8x128xf32>
    %c0_3 = arith.constant 0 : index
    %c0_4 = arith.constant 0 : index
    %4 = vector.load %arg2[%c0_3, %c0_4] : memref<8x32xf32, #tpu.memory_space<vmem>>, vector<8x32xf32>
    %5 = arith.truncf %4 : vector<8x32xf32> to vector<8x32xbf16>
    %c0_5 = arith.constant 0 : index
    %c0_6 = arith.constant 0 : index
    %6 = vector.load %arg4[%c0_5, %c0_6] : memref<32x128xbf16, #tpu.memory_space<vmem>>, vector<32x128xbf16>
    %cst_7 = arith.constant dense<0.000000e+00> : vector<8x128xf32>
    %7 = tpu.matmul %5, %6, %cst_7 {dimension_numbers = #tpu.dot_dimension_numbers<[1], [0], [0], [1], [0, 0, 1, 1], [], []>} : vector<8x32xbf16>, vector<32x128xbf16>, vector<8x128xf32> -> vector<8x128xf32>
    %8 = arith.addf %3, %7 : vector<8x128xf32>
    %c0_8 = arith.constant 0 : index
    %c0_9 = arith.constant 0 : index
    %9 = vector.load %arg5[%c0_8, %c0_9] : memref<1x128xf32, #tpu.memory_space<vmem>>, vector<1x128xf32>
    %10 = vector.broadcast %9 : vector<1x128xf32> to vector<8x128xf32>
    %11 = arith.addf %8, %10 : vector<8x128xf32>
    %cst_10 = arith.constant 0.000000e+00 : f32
    %12 = vector.broadcast %cst_10 : f32 to vector<8x128xf32>
    %13 = arith.maximumf %11, %12 : vector<8x128xf32>
    %14 = arith.truncf %13 : vector<8x128xf32> to vector<8x128xbf16>
    %c0_11 = arith.constant 0 : index
    %c0_12 = arith.constant 0 : index
    %15 = vector.load %arg6[%c0_11, %c0_12] : memref<128x8xbf16, #tpu.memory_space<vmem>>, vector<128x8xbf16>
    %cst_13 = arith.constant dense<0.000000e+00> : vector<8x8xf32>
    %16 = tpu.matmul %14, %15, %cst_13 {dimension_numbers = #tpu.dot_dimension_numbers<[1], [0], [0], [1], [0, 0, 1, 1], [], []>} : vector<8x128xbf16>, vector<128x8xbf16>, vector<8x8xf32> -> vector<8x8xf32>
    %c0_14 = arith.constant 0 : index
    %c0_15 = arith.constant 0 : index
    %17 = vector.load %arg7[%c0_14, %c0_15] : memref<1x8xf32, #tpu.memory_space<vmem>>, vector<1x8xf32>
    %18 = vector.broadcast %17 : vector<1x8xf32> to vector<8x8xf32>
    %19 = arith.addf %16, %18 : vector<8x8xf32>
    %c0_16 = arith.constant 0 : index
    %c0_17 = arith.constant 0 : index
    %20 = vector.load %arg8[%c0_16, %c0_17] : memref<8x8xf32, #tpu.memory_space<vmem>>, vector<8x8xf32>
    tpu.vector_store %arg8[%c0_16, %c0_17], %19 {strides = array<i32>} : memref<8x8xf32, #tpu.memory_space<vmem>>, vector<8x8xf32>,
    return
  }
  func.func @transform_0(%arg0: i32) -> (i32, i32) {
    %c0_i32 = arith.constant 0 : i32
    %c0_i32_0 = arith.constant 0 : i32
    return %arg0, %c0_i32 : i32, i32
  }
  func.func @transform_1(%arg0: i32) -> (i32, i32) {
    %c0_i32 = arith.constant 0 : i32
    %c0_i32_0 = arith.constant 0 : i32
    return %arg0, %c0_i32 : i32, i32
  }
  func.func @transform_2(%arg0: i32) -> (i32, i32) {
    %c0_i32 = arith.constant 0 : i32
    %c0_i32_0 = arith.constant 0 : i32
    %c0_i32_1 = arith.constant 0 : i32
    return %c0_i32, %c0_i32_0 : i32, i32
  }
  func.func @transform_3(%arg0: i32) -> (i32, i32) {
    %c0_i32 = arith.constant 0 : i32
    %c0_i32_0 = arith.constant 0 : i32
    %c0_i32_1 = arith.constant 0 : i32
    return %c0_i32, %c0_i32_0 : i32, i32
  }
  func.func @transform_4(%arg0: i32) -> (i32, i32) {
    %c0_i32 = arith.constant 0 : i32
    %c0_i32_0 = arith.constant 0 : i32
    %c0_i32_1 = arith.constant 0 : i32
    return %c0_i32, %c0_i32_0 : i32, i32
  }
  func.func @transform_5(%arg0: i32) -> (i32, i32) {
    %c0_i32 = arith.constant 0 : i32
    %c0_i32_0 = arith.constant 0 : i32
    %c0_i32_1 = arith.constant 0 : i32
    return %c0_i32, %c0_i32_0 : i32, i32
  }
  func.func @transform_6(%arg0: i32) -> (i32, i32) {
    %c0_i32 = arith.constant 0 : i32
    %c0_i32_0 = arith.constant 0 : i32
    %c0_i32_1 = arith.constant 0 : i32
    return %c0_i32, %c0_i32_0 : i32, i32
  }
  func.func @transform_7(%arg0: i32) -> (i32, i32) {
    %c0_i32 = arith.constant 0 : i32
    %c0_i32_0 = arith.constant 0 : i32
    return %arg0, %c0_i32 : i32, i32
  }
}

</mosaic_0001>

<llo_original>
// kernel: softmax_classifier.1
$region0: #{softmax_classifier.1}
  #allocation0 [shape = 'u32[]', space=smem, size = 0x4, offset = 0x4, fixed_abs, tag = 'smem constant byte address 0x4 - core index']
  #allocation1 [shape = 'u32[144,128]{1,0:T(1,128)}', space=vmem, size = 0x12000, scoped, tag = 'internal scratch']
  %s0 = inlined_call_operand.vmem [shape: f32[8,32], index: 0, kind: input, shape index: {}]
  %s1 = inlined_call_operand.vmem [shape: f32[8,32], index: 1, kind: input, shape index: {}]
  %s2 = inlined_call_operand.vmem [shape: bf16[32,128], index: 2, kind: input, shape index: {}]
  %s3 = inlined_call_operand.vmem [shape: bf16[32,128], index: 3, kind: input, shape index: {}]
  %s4 = inlined_call_operand.vmem [shape: f32[1,128], index: 4, kind: input, shape index: {}]
  %s5 = inlined_call_operand.vmem [shape: bf16[128,8], index: 5, kind: input, shape index: {}]
  %s6 = inlined_call_operand.vmem [shape: f32[1,8], index: 6, kind: input, shape index: {}]
  %s7 = inlined_call_operand.vmem [shape: f32[8,8], index: 7, kind: output, shape index: {}]
  %s8 = sld [smem:[#allocation0]]
  $region38: #{softmax_classifier.1} parent=0
    _
  %s10 = ssub.s32 1, %s8
  %s11 = scalar_select 0, %s10, %s8
  // Predicated region
  $region2: #{softmax_classifier.1} parent=0 // pred_check
    _
  $region3: #{softmax_classifier.1} parent=0 // pred_check_branch
    %13 = sbr.rel (0) target = $region5
  $region4: #{softmax_classifier.1} parent=0 // pred_region
    _
  $region5: #{softmax_classifier.1} parent=0 // pred_fallthru
    _
  // Predicated region
  $region6: #{softmax_classifier.1} parent=0 // pred_check
    _
  $region7: #{softmax_classifier.1} parent=0 // pred_check_branch
    %15 = sbr.rel (0) target = $region9
  $region8: #{softmax_classifier.1} parent=0 // pred_region
    _
  $region9: #{softmax_classifier.1} parent=0 // pred_fallthru
    _
  // Predicated region
  $region10: #{softmax_classifier.1} parent=0 // pred_check
    _
  $region11: #{softmax_classifier.1} parent=0 // pred_check_branch
    %17 = sbr.rel (0) target = $region13
  $region12: #{softmax_classifier.1} parent=0 // pred_region
    _
  $region13: #{softmax_classifier.1} parent=0 // pred_fallthru
    _
  // Predicated region
  $region14: #{softmax_classifier.1} parent=0 // pred_check
    _
  $region15: #{softmax_classifier.1} parent=0 // pred_check_branch
    %19 = sbr.rel (0) target = $region17
  $region16: #{softmax_classifier.1} parent=0 // pred_region
    _
  $region17: #{softmax_classifier.1} parent=0 // pred_fallthru
    _
  // Predicated region
  $region18: #{softmax_classifier.1} parent=0 // pred_check
    _
  $region19: #{softmax_classifier.1} parent=0 // pred_check_branch
    %21 = sbr.rel (0) target = $region21
  $region20: #{softmax_classifier.1} parent=0 // pred_region
    _
  $region21: #{softmax_classifier.1} parent=0 // pred_fallthru
    _
  // Predicated region
  $region22: #{softmax_classifier.1} parent=0 // pred_check
    _
  $region23: #{softmax_classifier.1} parent=0 // pred_check_branch
    %23 = sbr.rel (0) target = $region25
  $region24: #{softmax_classifier.1} parent=0 // pred_region
    _
  $region25: #{softmax_classifier.1} parent=0 // pred_fallthru
    _
  // Predicated region
  $region26: #{softmax_classifier.1} parent=0 // pred_check
    _
  $region27: #{softmax_classifier.1} parent=0 // pred_check_branch
    %25 = sbr.rel (0) target = $region29
  $region28: #{softmax_classifier.1} parent=0 // pred_region
    _
  $region29: #{softmax_classifier.1} parent=0 // pred_fallthru
    _
  %v27 = vld [vmem:[%s0] sm:$0xff]
  %v28 = vpack.c.bf16 %v27, %v27
  %v29 = vld [vmem:[%s2] sm:$0xf]
  %v30 = vld [vmem:[%s2 + $0x4] sm:$0xf]
  %v31 = vld [vmem:[%s2 + $0x8] sm:$0xf]
  %v32 = vld [vmem:[%s2 + $0xc] sm:$0xf]
  %v33 = vld [vmem:[%s1] sm:$0xff]
  %v34 = vpack.c.bf16 %v33, %v33
  %v35 = vld [vmem:[%s3] sm:$0xf]
  %v36 = vld [vmem:[%s3 + $0x4] sm:$0xf]
  %v37 = vld [vmem:[%s3 + $0x8] sm:$0xf]
  %v38 = vld [vmem:[%s3 + $0xc] sm:$0xf]
  %v43 = vunpack.c.l.b16 %v35
  %v44 = vunpack.c.l.b16 %v36
  %v45 = vunpack.c.l.b16 %v37
  %v46 = vunpack.c.l.b16 %v38
  %v47 = vpack.c.b16 %v44, %v43
  %v48 = vpack.c.b16 %v46, %v45
  %vm51 = vcmask 261120
  %v53 = vsel %vm51, %v34, 0
  %55 = vmatprep.subr.bf16.mxu0 0
  %56 = vmatpush1.bf16.msra.mxu0 %v47
  %57 = vmatprep.subr.bf16.mxu0 0
  %58 = vmatpush1.bf16.msra.mxu0 %v48
  %59 = vmatprep.subr.bf16.mxu0 0
  %60 = vmatpush1.bf16.msra.mxu0 0
  %61 = vmatprep.subr.bf16.mxu0 0
  %62 = vmatpush1.bf16.msra.mxu0 0
  %63 = vmatprep.subr.bf16.mxu0 0
  %64 = vmatpush1.bf16.msra.mxu0 0
  %65 = vmatprep.subr.bf16.mxu0 0
  %66 = vmatpush1.bf16.msra.mxu0 0
  %67 = vmatprep.subr.bf16.mxu0 0
  %68 = vmatpush1.bf16.msra.mxu0 0
  %69 = vmatprep.subr.bf16.mxu0 0
  %70 = vmatpush1.bf16.msra.mxu0 0
  %71 = vmatprep.subr.bf16.mxu0 0
  %72 = vmatpush1.bf16.msra.mxu0 0
  %73 = vmatprep.subr.bf16.mxu0 0
  %74 = vmatpush1.bf16.msra.mxu0 0
  %75 = vmatprep.subr.bf16.mxu0 0
  %76 = vmatpush1.bf16.msra.mxu0 0
  %77 = vmatprep.subr.bf16.mxu0 0
  %78 = vmatpush1.bf16.msra.mxu0 0
  %79 = vmatprep.subr.bf16.mxu0 0
  %80 = vmatpush1.bf16.msra.mxu0 0
  %81 = vmatprep.subr.bf16.mxu0 0
  %82 = vmatpush1.bf16.msra.mxu0 0
  %83 = vmatprep.subr.bf16.mxu0 0
  %84 = vmatpush1.bf16.msra.mxu0 0
  %85 = vmatprep.subr.bf16.mxu0 0
  %86 = vmatpush1.bf16.msra.mxu0 0
  %87 = vmatprep.mubr.bf16.mxu0 0
  %88 = vmatmul.mubr.bf16.gmra.mrb[0].mxu0 %v53
  %v89 = vpop.f32.mrb[0].mxu0
  %v90 = vadd.f32 0.0, %v89
  %v91 = vpop.f32.mrb[0].mxu0
  %v92 = vpop.f32.mrb[0].mxu0
  %v93 = vpop.f32.mrb[0].mxu0
  %94 = vdwg.mxu0
  %v99 = vunpack.c.l.b16 %v29
  %v100 = vunpack.c.l.b16 %v30
  %v101 = vunpack.c.l.b16 %v31
  %v102 = vunpack.c.l.b16 %v32
  %v103 = vpack.c.b16 %v100, %v99
  %v104 = vpack.c.b16 %v102, %v101
  %v108 = vsel %vm51, %v28, 0
  %110 = vmatprep.subr.bf16.mxu0 0
  %111 = vmatpush1.bf16.msra.mxu0 %v103
  %112 = vmatprep.subr.bf16.mxu0 0
  %113 = vmatpush1.bf16.msra.mxu0 %v104
  %114 = vmatprep.subr.bf16.mxu0 0
  %115 = vmatpush1.bf16.msra.mxu0 0
  %116 = vmatprep.subr.bf16.mxu0 0
  %117 = vmatpush1.bf16.msra.mxu0 0
  %118 = vmatprep.subr.bf16.mxu0 0
  %119 = vmatpush1.bf16.msra.mxu0 0
  %120 = vmatprep.subr.bf16.mxu0 0
  %121 = vmatpush1.bf16.msra.mxu0 0
  %122 = vmatprep.subr.bf16.mxu0 0
  %123 = vmatpush1.bf16.msra.mxu0 0
  %124 = vmatprep.subr.bf16.mxu0 0
  %125 = vmatpush1.bf16.msra.mxu0 0
  %126 = vmatprep.subr.bf16.mxu0 0
  %127 = vmatpush1.bf16.msra.mxu0 0
  %128 = vmatprep.subr.bf16.mxu0 0
  %129 = vmatpush1.bf16.msra.mxu0 0
  %130 = vmatprep.subr.bf16.mxu0 0
  %131 = vmatpush1.bf16.msra.mxu0 0
  %132 = vmatprep.subr.bf16.mxu0 0
  %133 = vmatpush1.bf16.msra.mxu0 0
  %134 = vmatprep.subr.bf16.mxu0 0
  %135 = vmatpush1.bf16.msra.mxu0 0
  %136 = vmatprep.subr.bf16.mxu0 0
  %137 = vmatpush1.bf16.msra.mxu0 0
  %138 = vmatprep.subr.bf16.mxu0 0
  %139 = vmatpush1.bf16.msra.mxu0 0
  %140 = vmatprep.subr.bf16.mxu0 0
  %141 = vmatpush1.bf16.msra.mxu0 0
  %142 = vmatprep.mubr.bf16.mxu0 0
  %143 = vmatmul.mubr.bf16.gmra.mrb[0].mxu0 %v108
  %v144 = vpop.f32.mrb[0].mxu0
  %v145 = vadd.f32 %v90, %v144
  %v146 = vpop.f32.mrb[0].mxu0
  %v147 = vpop.f32.mrb[0].mxu0
  %v148 = vpop.f32.mrb[0].mxu0
  %149 = vdwg.mxu0
  %v150 = vld [vmem:[%s4] sm:$0x1]
  %v152 = vlaneseq
  %v153 = vshrl.u32 %v152, 7
  %v154 = vsub.s32 0, %v153
  %v155 = vrot.slane %v150, %v154
  %v157 = vadd.f32 %v145, %v155
  %v158 = vmax.f32 %v157, 0.0
  %v159 = vpack.c.bf16 %v158, %v158
  %v160 = vld [vmem:[%s5] sm:$0xf]
  %v161 = vld [vmem:[%s5 + $0x4] sm:$0xf]
  %v162 = vld [vmem:[%s5 + $0x8] sm:$0xf]
  %v163 = vld [vmem:[%s5 + $0xc] sm:$0xf]
  %v164 = vld [vmem:[%s5 + $0x10] sm:$0xf]
  %v165 = vld [vmem:[%s5 + $0x14] sm:$0xf]
  %v166 = vld [vmem:[%s5 + $0x18] sm:$0xf]
  %v167 = vld [vmem:[%s5 + $0x1c] sm:$0xf]
  %v168 = vld [vmem:[%s5 + $0x20] sm:$0xf]
  %v169 = vld [vmem:[%s5 + $0x24] sm:$0xf]
  %v170 = vld [vmem:[%s5 + $0x28] sm:$0xf]
  %v171 = vld [vmem:[%s5 + $0x2c] sm:$0xf]
  %v172 = vld [vmem:[%s5 + $0x30] sm:$0xf]
  %v173 = vld [vmem:[%s5 + $0x34] sm:$0xf]
  %v174 = vld [vmem:[%s5 + $0x38] sm:$0xf]
  %v175 = vld [vmem:[%s5 + $0x3c] sm:$0xf]
  %v176 = vld [vmem:[%s6] sm:$0x1]
  %v178 = vlaneseq
  %v179 = vshrl.u32 %v178, 7
  %v180 = vsub.s32 0, %v179
  %v181 = vrot.slane %v176, %v180
  %v199 = vunpack.c.l.b16 %v160
  %v200 = vunpack.c.l.b16 %v161
  %v201 = vunpack.c.l.b16 %v162
  %v202 = vunpack.c.l.b16 %v163
  %v203 = vunpack.c.l.b16 %v164
  %v204 = vunpack.c.l.b16 %v165
  %v205 = vunpack.c.l.b16 %v166
  %v206 = vunpack.c.l.b16 %v167
  %v207 = vunpack.c.l.b16 %v168
  %v208 = vunpack.c.l.b16 %v169
  %v209 = vunpack.c.l.b16 %v170
  %v210 = vunpack.c.l.b16 %v171
  %v211 = vunpack.c.l.b16 %v172
  %v212 = vunpack.c.l.b16 %v173
  %v213 = vunpack.c.l.b16 %v174
  %v214 = vunpack.c.l.b16 %v175
  %v215 = vpack.c.b16 %v200, %v199
  %v216 = vpack.c.b16 %v202, %v201
  %v217 = vpack.c.b16 %v204, %v203
  %v218 = vpack.c.b16 %v206, %v205
  %v219 = vpack.c.b16 %v208, %v207
  %v220 = vpack.c.b16 %v210, %v209
  %v221 = vpack.c.b16 %v212, %v211
  %v222 = vpack.c.b16 %v214, %v213
  %231 = vmatprep.subr.bf16.mxu0 0
  %232 = vmatpush1.bf16.msra.mxu0 %v215
  %233 = vmatprep.subr.bf16.mxu0 0
  %234 = vmatpush1.bf16.msra.mxu0 %v216
  %235 = vmatprep.subr.bf16.mxu0 0
  %236 = vmatpush1.bf16.msra.mxu0 %v217
  %237 = vmatprep.subr.bf16.mxu0 0
  %238 = vmatpush1.bf16.msra.mxu0 %v218
  %239 = vmatprep.subr.bf16.mxu0 0
  %240 = vmatpush1.bf16.msra.mxu0 %v219
  %241 = vmatprep.subr.bf16.mxu0 0
  %242 = vmatpush1.bf16.msra.mxu0 %v220
  %243 = vmatprep.subr.bf16.mxu0 0
  %244 = vmatpush1.bf16.msra.mxu0 %v221
  %245 = vmatprep.subr.bf16.mxu0 0
  %246 = vmatpush1.bf16.msra.mxu0 %v222
  %247 = vmatprep.subr.bf16.mxu0 0
  %248 = vmatpush1.bf16.msra.mxu0 0
  %249 = vmatprep.subr.bf16.mxu0 0
  %250 = vmatpush1.bf16.msra.mxu0 0
  %251 = vmatprep.subr.bf16.mxu0 0
  %252 = vmatpush1.bf16.msra.mxu0 0
  %253 = vmatprep.subr.bf16.mxu0 0
  %254 = vmatpush1.bf16.msra.mxu0 0
  %255 = vmatprep.subr.bf16.mxu0 0
  %256 = vmatpush1.bf16.msra.mxu0 0
  %257 = vmatprep.subr.bf16.mxu0 0
  %258 = vmatpush1.bf16.msra.mxu0 0
  %259 = vmatprep.subr.bf16.mxu0 0
  %260 = vmatpush1.bf16.msra.mxu0 0
  %261 = vmatprep.subr.bf16.mxu0 0
  %262 = vmatpush1.bf16.msra.mxu0 0
  %263 = vmatprep.mubr.bf16.mxu0 0
  %264 = vmatmul.mubr.bf16.gmra.mrb[0].mxu0 %v159
  %v265 = vpop.f32.mrb[0].mxu0
  %v266 = vadd.f32 %v181, %v265
  %v267 = vpop.f32.mrb[0].mxu0
  %v268 = vpop.f32.mrb[0].mxu0
  %v269 = vpop.f32.mrb[0].mxu0
  %270 = vdwg.mxu0
  %vm271 = vcmask 64512
  %272 = vst.msk [vmem:[%s7] sm:$0xff] %vm271, %v266
  // Predicated region
  $region30: #{softmax_classifier.1} parent=0 // pred_check
    _
  $region31: #{softmax_classifier.1} parent=0 // pred_check_branch
    %274 = sbr.rel (0) target = $region33
  $region32: #{softmax_classifier.1} parent=0 // pred_region
    _
  $region33: #{softmax_classifier.1} parent=0 // pred_fallthru
    _
  // Predicated region
  $region34: #{softmax_classifier.1} parent=0 // pred_check
    _
  $region35: #{softmax_classifier.1} parent=0 // pred_check_branch
    %276 = sbr.rel (0) target = $region37
  $region36: #{softmax_classifier.1} parent=0 // pred_region
    _
  $region37: #{softmax_classifier.1} parent=0 // pred_fallthru
    _

</llo_original>
